<compile_context>
chip_gen: v5e
topology: v5e:2x2
jax: 0.10.0
libtpu: 0.0.40
codegen_flags: <defaults>
</compile_context>

<pallas_src>
import math

import jax
import jax.numpy as jnp
import numpy as np
from jax import lax
from jax.experimental import pallas as pl
from jax.experimental.pallas import tpu as pltpu


def _make_kernel(cblk, Ho, W, w0, w1, w2, out_dtype):
    """Pallas kernel for a (cblk, Ho, 2W) row-pair-packed block."""
    NEG = -jnp.inf

    def kernel(x_ref, o_ref):
        # x_ref: (cblk, Ho, 2W); lanes [0,W) = x row 2p, lanes [W,2W) = x row 2p+1
        # o_ref: (cblk, Ho, W) ; blurred rows, even lanes are the stride-2 outputs
        a = x_ref[:, :, 0:W].astype(jnp.float32)        # x[2p,   :]
        b = x_ref[:, :, W:2 * W].astype(jnp.float32)    # x[2p+1, :]

        lane = lax.broadcasted_iota(jnp.int32, (cblk, Ho, W), 2)
        row = lax.broadcasted_iota(jnp.int32, (cblk, Ho, W), 1)

        sh1_l = 1 % W            # lane shift by +1
        sh1_r = 1 % Ho           # sublane shift by +1
        shm1_r = (Ho - 1) % Ho   # sublane shift by -1 (positive equivalent)

        # Column-pair maxima m[r, j] = max(x[r, j-1], x[r, j]); shifts on the XLU.
        a_l = jnp.where(lane == 0, NEG, pltpu.roll(a, shift=sh1_l, axis=2))
        b_l = jnp.where(lane == 0, NEG, pltpu.roll(b, shift=sh1_l, axis=2))
        ma = jnp.maximum(a_l, a)      # m[2p,   j]
        mb = jnp.maximum(b_l, b)      # m[2p+1, j]

        # Row-shifted variants (sublane rotations), -inf at the image border.
        mb_up = jnp.where(row == 0, NEG, pltpu.roll(mb, shift=sh1_r, axis=1))        # m[2p-1, j]
        ma_dn = jnp.where(row == Ho - 1, NEG, pltpu.roll(ma, shift=shm1_r, axis=1))  # m[2p+2, j]

        # Max-pool rows feeding output row p: tmp[i, j] = max(m[i-1, j], m[i, j]).
        t0 = jnp.maximum(mb_up, ma)   # tmp[2p,   j]
        t1 = jnp.maximum(ma, mb)      # tmp[2p+1, j]
        t2 = jnp.maximum(mb, ma_dn)   # tmp[2p+2, j]

        # H-direction 3-tap binomial blur (exact f32 VPU work), columns 0..W-1.
        u = w0 * t0 + w1 * t1 + w2 * t2

        # Column W of tmp (right -inf border): tmp[i, W] = max(x[i-1, W-1], x[i, W-1]).
        acol = a[:, :, W - 1:W]
        bcol = b[:, :, W - 1:W]
        rowc = row[:, :, 0:1]
        bcol_up = jnp.where(rowc == 0, NEG, pltpu.roll(bcol, shift=sh1_r, axis=1))
        acol_dn = jnp.where(rowc == Ho - 1, NEG, pltpu.roll(acol, shift=shm1_r, axis=1))
        ulast = (w0 * jnp.maximum(bcol_up, acol)
                 + w1 * jnp.maximum(acol, bcol)
                 + w2 * jnp.maximum(bcol, acol_dn))     # H-blurred tmp[:, W], shape (cblk, Ho, 1)

        # W-direction 3-tap blur: s[j] = w0*u[j] + w1*u[j+1] + w2*u[j+2].
        # Even lanes j=2q hold out[p, q]; odd lanes are don't-care.
        u1 = pltpu.roll(u, shift=W - 1, axis=2)           # u[j+1] (wrap only at odd tail lane)
        u2 = pltpu.roll(u, shift=(W - 2) % W, axis=2)     # u[j+2]
        u2 = jnp.where(lane == W - 2, ulast, u2)          # u[W] at the last even lane
        s = w0 * u + w1 * u1 + w2 * u2

        o_ref[...] = s.astype(out_dtype)

    return kernel


def maxpool2d_aa(x, kernel_size=2, ratio=1.7, block_channels=None):
    if kernel_size != 2 or int(ratio * kernel_size) != 3:
        raise NotImplementedError(
            "Pallas kernel is specialized to kernel_size=2, int(ratio*kernel_size)==3 "
            "(the module defaults)."
        )
    B, C, H, W = x.shape
    assert H % 2 == 0 and W % 2 == 0 and H >= 2 and W >= 2, "even H, W required"
    N = B * C
    Ho, Wo = H // 2, W // 2

    # Binomial blur taps: binom.pmf(range(3), 3, 0.5) = [1/8, 3/8, 3/8].
    blur_ks = 3
    base = [math.comb(blur_ks, k) * 0.5 ** blur_ks for k in range(blur_ks)]
    w0, w1, w2 = (float(v) for v in base)

    # Preserve the input dtype (bf16 in -> bf16 out); accumulate in f32 in-kernel.
    out_dtype = x.dtype if jnp.issubdtype(x.dtype, jnp.floating) else jnp.float32
    in_bytes = np.dtype(x.dtype).itemsize
    out_bytes = np.dtype(out_dtype).itemsize

    # Row-pair packed view (free, contiguous reshape): packed[n, p, 0:W]  = x row 2p,
    #                                                  packed[n, p, W:2W] = x row 2p+1.
    xr = x.reshape(N, Ho, 2 * W)

    # Per-channel VMEM footprint: double-buffered in/out blocks plus headroom for
    # ~8 live f32 full-width intermediates the compiler keeps in vregs / spill VMEM.
    per_chan = (2 * Ho * 2 * W * in_bytes
                + 2 * Ho * W * out_bytes
                + 8 * Ho * W * 4)
    budget = 6 * 1024 * 1024  # ~6 MiB of blocks per step; comfortably under v7x's 64 MiB VMEM

    if block_channels is None:
        cap = max(1, budget // max(per_chan, 1))
        steps = pl.cdiv(N, min(cap, N))
        if N >= 2:
            steps = max(steps, 2)      # >=2 steps: DMA/compute overlap + megacore sharding
            if steps % 2:
                steps += 1             # even split across the 2 TensorCores on v7x
        steps = min(steps, N)
        cblk = pl.cdiv(N, steps)
    else:
        cblk = int(min(block_channels, N))
    num_blocks = pl.cdiv(N, cblk)      # tail block (if any) is partial and masked by Pallas

    kernel = _make_kernel(cblk, Ho, W, w0, w1, w2, out_dtype)
    out_rows = pl.pallas_call(
        kernel,
        out_shape=jax.ShapeDtypeStruct((N, Ho, W), out_dtype),
        grid=(num_blocks,),
        in_specs=[pl.BlockSpec((cblk, Ho, 2 * W), lambda i: (i, 0, 0))],
        out_specs=pl.BlockSpec((cblk, Ho, W), lambda i: (i, 0, 0)),
        compiler_params=pltpu.CompilerParams(
            dimension_semantics=("parallel",),
            vmem_limit_bytes=48 * 1024 * 1024,
        ),
    )(xr)

    # Even lanes of each blurred row are the stride-2 outputs.
    # TODO(synk): fold this stride-2 lane selection into the kernel (emit an
    # (N, Ho, Wo) output directly) once a reliably-lowering lane-compaction
    # primitive (lane-strided load / lane gather) is available; kept wrapper-side
    # so every in-kernel op is a guaranteed-supported Mosaic primitive.
    return out_rows[:, :, 0::2].reshape(B, C, Ho, Wo)


def reference_numpy(x_np, kernel_size=2, ratio=1.7):
    """Pure numpy reference mirroring the PyTorch forward exactly."""
    B, C, H, W = x_np.shape
    ks = kernel_size
    stride = ks
    blur_ks = int(ratio * ks)
    base = np.array(
        [math.comb(blur_ks, k) * 0.5 ** blur_ks for k in range(blur_ks)],
        dtype=np.float64,
    )
    w2d = (base[:, None] * base[None, :]).astype(np.float32)
    pad = ks // 2
    Hp, Wp = H + 2 * pad, W + 2 * pad
    xp = np.full((B, C, Hp, Wp), -np.inf, dtype=np.float32)
    xp[:, :, pad:pad + H, pad:pad + W] = x_np
    Ht, Wt = Hp - ks + 1, Wp - ks + 1
    tmp = np.full((B, C, Ht, Wt), -np.inf, dtype=np.float32)
    for di in range(ks):
        for dj in range(ks):
            tmp = np.maximum(tmp, xp[:, :, di:di + Ht, dj:dj + Wt])
    Ho = (Ht - blur_ks) // stride + 1
    Wo = (Wt - blur_ks) // stride + 1
    out = np.zeros((B, C, Ho, Wo), dtype=np.float32)
    for a in range(blur_ks):
        for b in range(blur_ks):
            out += w2d[a, b] * tmp[
                :, :,
                a:a + (Ho - 1) * stride + 1:stride,
                b:b + (Wo - 1) * stride + 1:stride,
            ]
    return out


if __name__ == "__main__":
    key = jax.random.PRNGKey(0)
    x = jax.random.normal(key, (2, 4, 16, 16), dtype=jnp.float32)

    out = maxpool2d_aa(x, kernel_size=2, ratio=1.7)
    out = jax.block_until_ready(out)

    ref = reference_numpy(np.asarray(x), kernel_size=2, ratio=1.7)
    assert out.shape == ref.shape, (out.shape, ref.shape)
    np.testing.assert_allclose(np.asarray(out), ref, rtol=1e-5, atol=1e-5)

    print("KERNEL_OK")
</pallas_src>

<mosaic_0001>
module attributes {stable_mosaic.version = 11 : i64} {
  func.func @kernel(%arg0: i32, %arg1: memref<4x8x32xf32, #tpu.memory_space<vmem>>, %arg2: memref<4x8x16xf32, #tpu.memory_space<vmem>>) attributes {dimension_semantics = [#tpu.dimension_semantics<parallel>], iteration_bounds = array<i64: 2>, scalar_prefetch = 0 : i64, scratch_operands = 0 : i64, tpu.core_type = #tpu.core_type<tc>, window_params = [{transform_indices = @transform_0, window_bounds = array<i64: 4, 8, 32>}, {transform_indices = @transform_1, window_bounds = array<i64: 4, 8, 16>}]} {
    %c0 = arith.constant 0 : index
    %c0_0 = arith.constant 0 : index
    %c0_1 = arith.constant 0 : index
    %0 = vector.load %arg1[%c0, %c0_0, %c0_1] : memref<4x8x32xf32, #tpu.memory_space<vmem>>, vector<4x8x16xf32>
    %c0_2 = arith.constant 0 : index
    %c0_3 = arith.constant 0 : index
    %c16 = arith.constant 16 : index
    %1 = vector.load %arg1[%c0_2, %c0_3, %c16] : memref<4x8x32xf32, #tpu.memory_space<vmem>>, vector<4x8x16xf32>
    %2 = tpu.iota {dimensions = array<i32: 2>} : vector<4x8x16xi32>
    %3 = tpu.iota {dimensions = array<i32: 1>} : vector<4x8x16xi32>
    %c0_i32 = arith.constant 0 : i32
    %4 = vector.broadcast %c0_i32 : i32 to vector<4x8x16xi32>
    %5 = arith.cmpi eq, %2, %4 : vector<4x8x16xi32>
    %c1_i32 = arith.constant 1 : i32
    %6 = tpu.dynamic_rotate %0 by %c1_i32 dim 2 : vector<4x8x16xf32>, i32 -> vector<4x8x16xf32>
    %cst = arith.constant 0xFF800000 : f32
    %7 = vector.broadcast %cst : f32 to vector<4x8x16xf32>
    %8 = arith.select %5, %7, %6 : vector<4x8x16xi1>, vector<4x8x16xf32>
    %c0_i32_4 = arith.constant 0 : i32
    %9 = vector.broadcast %c0_i32_4 : i32 to vector<4x8x16xi32>
    %10 = arith.cmpi eq, %2, %9 : vector<4x8x16xi32>
    %c1_i32_5 = arith.constant 1 : i32
    %11 = tpu.dynamic_rotate %1 by %c1_i32_5 dim 2 : vector<4x8x16xf32>, i32 -> vector<4x8x16xf32>
    %cst_6 = arith.constant 0xFF800000 : f32
    %12 = vector.broadcast %cst_6 : f32 to vector<4x8x16xf32>
    %13 = arith.select %10, %12, %11 : vector<4x8x16xi1>, vector<4x8x16xf32>
    %14 = arith.maximumf %8, %0 : vector<4x8x16xf32>
    %15 = arith.maximumf %13, %1 : vector<4x8x16xf32>
    %c0_i32_7 = arith.constant 0 : i32
    %16 = vector.broadcast %c0_i32_7 : i32 to vector<4x8x16xi32>
    %17 = arith.cmpi eq, %3, %16 : vector<4x8x16xi32>
    %c1_i32_8 = arith.constant 1 : i32
    %18 = tpu.dynamic_rotate %15 by %c1_i32_8 dim 1 : vector<4x8x16xf32>, i32 -> vector<4x8x16xf32>
    %cst_9 = arith.constant 0xFF800000 : f32
    %19 = vector.broadcast %cst_9 : f32 to vector<4x8x16xf32>
    %20 = arith.select %17, %19, %18 : vector<4x8x16xi1>, vector<4x8x16xf32>
    %c7_i32 = arith.constant 7 : i32
    %21 = vector.broadcast %c7_i32 : i32 to vector<4x8x16xi32>
    %22 = arith.cmpi eq, %3, %21 : vector<4x8x16xi32>
    %c7_i32_10 = arith.constant 7 : i32
    %23 = tpu.dynamic_rotate %14 by %c7_i32_10 dim 1 : vector<4x8x16xf32>, i32 -> vector<4x8x16xf32>
    %cst_11 = arith.constant 0xFF800000 : f32
    %24 = vector.broadcast %cst_11 : f32 to vector<4x8x16xf32>
    %25 = arith.select %22, %24, %23 : vector<4x8x16xi1>, vector<4x8x16xf32>
    %26 = arith.maximumf %20, %14 : vector<4x8x16xf32>
    %27 = arith.maximumf %14, %15 : vector<4x8x16xf32>
    %28 = arith.maximumf %15, %25 : vector<4x8x16xf32>
    %cst_12 = arith.constant 1.250000e-01 : f32
    %29 = vector.broadcast %cst_12 : f32 to vector<4x8x16xf32>
    %30 = arith.mulf %29, %26 : vector<4x8x16xf32>
    %cst_13 = arith.constant 3.750000e-01 : f32
    %31 = vector.broadcast %cst_13 : f32 to vector<4x8x16xf32>
    %32 = arith.mulf %31, %27 : vector<4x8x16xf32>
    %33 = arith.addf %30, %32 : vector<4x8x16xf32>
    %cst_14 = arith.constant 3.750000e-01 : f32
    %34 = vector.broadcast %cst_14 : f32 to vector<4x8x16xf32>
    %35 = arith.mulf %34, %28 : vector<4x8x16xf32>
    %36 = arith.addf %33, %35 : vector<4x8x16xf32>
    %37 = vector.extract_strided_slice %0 {offsets = [0, 0, 15], sizes = [4, 8, 1], strides = [1, 1, 1]} : vector<4x8x16xf32> to vector<4x8x1xf32>
    %38 = vector.extract_strided_slice %1 {offsets = [0, 0, 15], sizes = [4, 8, 1], strides = [1, 1, 1]} : vector<4x8x16xf32> to vector<4x8x1xf32>
    %39 = vector.extract_strided_slice %3 {offsets = [0, 0, 0], sizes = [4, 8, 1], strides = [1, 1, 1]} : vector<4x8x16xi32> to vector<4x8x1xi32>
    %c0_i32_15 = arith.constant 0 : i32
    %40 = vector.broadcast %c0_i32_15 : i32 to vector<4x8x1xi32>
    %41 = arith.cmpi eq, %39, %40 : vector<4x8x1xi32>
    %c1_i32_16 = arith.constant 1 : i32
    %42 = tpu.dynamic_rotate %38 by %c1_i32_16 dim 1 : vector<4x8x1xf32>, i32 -> vector<4x8x1xf32>
    %cst_17 = arith.constant 0xFF800000 : f32
    %43 = vector.broadcast %cst_17 : f32 to vector<4x8x1xf32>
    %44 = arith.select %41, %43, %42 : vector<4x8x1xi1>, vector<4x8x1xf32>
    %c7_i32_18 = arith.constant 7 : i32
    %45 = vector.broadcast %c7_i32_18 : i32 to vector<4x8x1xi32>
    %46 = arith.cmpi eq, %39, %45 : vector<4x8x1xi32>
    %c7_i32_19 = arith.constant 7 : i32
    %47 = tpu.dynamic_rotate %37 by %c7_i32_19 dim 1 : vector<4x8x1xf32>, i32 -> vector<4x8x1xf32>
    %cst_20 = arith.constant 0xFF800000 : f32
    %48 = vector.broadcast %cst_20 : f32 to vector<4x8x1xf32>
    %49 = arith.select %46, %48, %47 : vector<4x8x1xi1>, vector<4x8x1xf32>
    %50 = arith.maximumf %44, %37 : vector<4x8x1xf32>
    %cst_21 = arith.constant 1.250000e-01 : f32
    %51 = vector.broadcast %cst_21 : f32 to vector<4x8x1xf32>
    %52 = arith.mulf %51, %50 : vector<4x8x1xf32>
    %53 = arith.maximumf %37, %38 : vector<4x8x1xf32>
    %cst_22 = arith.constant 3.750000e-01 : f32
    %54 = vector.broadcast %cst_22 : f32 to vector<4x8x1xf32>
    %55 = arith.mulf %54, %53 : vector<4x8x1xf32>
    %56 = arith.addf %52, %55 : vector<4x8x1xf32>
    %57 = arith.maximumf %38, %49 : vector<4x8x1xf32>
    %cst_23 = arith.constant 3.750000e-01 : f32
    %58 = vector.broadcast %cst_23 : f32 to vector<4x8x1xf32>
    %59 = arith.mulf %58, %57 : vector<4x8x1xf32>
    %60 = arith.addf %56, %59 : vector<4x8x1xf32>
    %c15_i32 = arith.constant 15 : i32
    %61 = tpu.dynamic_rotate %36 by %c15_i32 dim 2 : vector<4x8x16xf32>, i32 -> vector<4x8x16xf32>
    %c14_i32 = arith.constant 14 : i32
    %62 = tpu.dynamic_rotate %36 by %c14_i32 dim 2 : vector<4x8x16xf32>, i32 -> vector<4x8x16xf32>
    %c14_i32_24 = arith.constant 14 : i32
    %63 = vector.broadcast %c14_i32_24 : i32 to vector<4x8x16xi32>
    %64 = arith.cmpi eq, %2, %63 : vector<4x8x16xi32>
    %65 = vector.shape_cast %60 : vector<4x8x1xf32> to vector<4x8x1xf32>
    %66 = vector.broadcast %65 : vector<4x8x1xf32> to vector<4x8x16xf32>
    %67 = arith.select %64, %66, %62 : vector<4x8x16xi1>, vector<4x8x16xf32>
    %cst_25 = arith.constant 1.250000e-01 : f32
    %68 = vector.broadcast %cst_25 : f32 to vector<4x8x16xf32>
    %69 = arith.mulf %68, %36 : vector<4x8x16xf32>
    %cst_26 = arith.constant 3.750000e-01 : f32
    %70 = vector.broadcast %cst_26 : f32 to vector<4x8x16xf32>
    %71 = arith.mulf %70, %61 : vector<4x8x16xf32>
    %72 = arith.addf %69, %71 : vector<4x8x16xf32>
    %cst_27 = arith.constant 3.750000e-01 : f32
    %73 = vector.broadcast %cst_27 : f32 to vector<4x8x16xf32>
    %74 = arith.mulf %73, %67 : vector<4x8x16xf32>
    %75 = arith.addf %72, %74 : vector<4x8x16xf32>
    %c0_28 = arith.constant 0 : index
    %c0_29 = arith.constant 0 : index
    %c0_30 = arith.constant 0 : index
    %76 = vector.load %arg2[%c0_28, %c0_29, %c0_30] : memref<4x8x16xf32, #tpu.memory_space<vmem>>, vector<4x8x16xf32>
    tpu.vector_store %arg2[%c0_28, %c0_29, %c0_30], %75 {strides = array<i32>} : memref<4x8x16xf32, #tpu.memory_space<vmem>>, vector<4x8x16xf32>,
    return
  }
  func.func @transform_0(%arg0: i32) -> (i32, i32, i32) {
    %c0_i32 = arith.constant 0 : i32
    %c0_i32_0 = arith.constant 0 : i32
    %c0_i32_1 = arith.constant 0 : i32
    return %arg0, %c0_i32, %c0_i32_0 : i32, i32, i32
  }
  func.func @transform_1(%arg0: i32) -> (i32, i32, i32) {
    %c0_i32 = arith.constant 0 : i32
    %c0_i32_0 = arith.constant 0 : i32
    %c0_i32_1 = arith.constant 0 : i32
    return %arg0, %c0_i32, %c0_i32_0 : i32, i32, i32
  }
}

</mosaic_0001>

<llo_original>
// kernel: tpu_custom_call.1
$region0: #{tpu_custom_call.1}
  #allocation0 [shape = 'u32[]', space=smem, size = 0x4, offset = 0x4, fixed_abs, tag = 'smem constant byte address 0x4 - core index']
  #allocation1 [shape = 'u32[72,128]{1,0:T(1,128)}', space=vmem, size = 0x9000, scoped, tag = 'internal scratch']
  %s0 = inlined_call_operand.hbm [shape: f32[8,8,32], index: 0, kind: input, shape index: {}]
  %s1 = inlined_call_operand.hbm [shape: f32[8,8,16], index: 1, kind: output, shape index: {}]
  %s2 = sld [smem:[#allocation0]]
  $region41: #{tpu_custom_call.1} parent=0
    _
  %s4 = ssub.s32 1, %s2
  %s5 = scalar_select 0, %s4, %s2
  $region1: #{tpu_custom_call.1} parent=0
    #allocation2 [shape = 'u8[32768]{0}', space=vmem, size = 0x8000, scoped, tag = 'input window, operand 0']
    #allocation3 [shape = 's32[2]{0}', space=sflag, size = 0x8, scoped, tag = 'scoped memory for tpu_custom_call.1']
    #allocation4 [shape = 's32[2]{0}', space=sflag, size = 0x8, scoped, tag = 'scoped memory for tpu_custom_call.1']
    #allocation5 [shape = 'u8[32768]{0}', space=vmem, size = 0x8000, scoped, tag = 'output window, operand 0']
    %6 = vsyncpa [#allocation3], 0
    %s7 = scalar_lea.sflag [#allocation3], 1
    %8 = vsyncpa %s7, 0
    %9 = vsyncpa [#allocation4], 0
    %s10 = scalar_lea.sflag [#allocation4], 1
    %11 = vsyncpa %s10, 0
    loop: start=0, step=1, limit=4
    $region2: #{tpu_custom_call.1} parent=1 // loop_pre_header
      _
    $region3: #{tpu_custom_call.1} parent=1 // loop_header
      %s13 = sphi 0, %s17
      %p14 = scmp.ge.s32.totalorder %s13, 4
      %s23 = sphi 0, %s25
      %s26 = sphi 0, %s23
      %s27 = sphi 0, %s26
      %s43 = sphi 0, %s27
      %s49 = sphi 0, %s51
      %s52 = sphi 0, %s49
      %s53 = sphi 0, %s52
      %s69 = sphi 0, %s53
    $region4: #{tpu_custom_call.1} parent=1 // loop_header_branch
      %16 = sbr.rel (%p14) target = $region8
    $region5: #{tpu_custom_call.1} parent=1 // loop_body
      %s18 = ssub.s32 %s13, 1
      %s19 = ssub.s32 %s13, 2
      %s20 = sadd.s32 %s13, 1
      %s21 = ssub.s32 %s13, %s20
      %p22 = scmp.eq.s32.totalorder %s21, 0
      %s24 = sadd.s32 %s23, 1
      %s25 = scalar_select %p22, %s23, %s24
      %p28 = pneg %p22
      %p29 = scmp.eq.s32.totalorder %s13, 1
      %p30 = por %p28, %p29
      %p31 = scmp.ne.s32.totalorder %s23, %s26
      %p32 = scmp.eq.s32.totalorder %s13, 0
      %p33 = por %p31, %p32
      %p34 = scmp.ne.s32.totalorder %s23, %s26
      %p35 = scmp.eq.s32.totalorder %s18, 1
      %p36 = por %p34, %p35
      %p37 = scmp.ne.s32.totalorder %s26, %s27
      %p38 = scmp.eq.s32.totalorder %s18, 0
      %p39 = por %p37, %p38
      %p40 = scmp.ne.s32.totalorder %s26, %s27
      %p41 = scmp.eq.s32.totalorder %s19, 1
      %p42 = por %p40, %p41
      %p44 = scmp.ne.s32.totalorder %s27, %s43
      %p45 = scmp.eq.s32.totalorder %s19, 0
      %p46 = por %p44, %p45
      %s47 = ssub.s32 %s13, %s20
      %p48 = scmp.eq.s32.totalorder %s47, 0
      %s50 = sadd.s32 %s49, 1
      %s51 = scalar_select %p48, %s49, %s50
      %p54 = pneg %p48
      %p55 = scmp.eq.s32.totalorder %s13, 1
      %p56 = por %p54, %p55
      %p57 = scmp.ne.s32.totalorder %s49, %s52
      %p58 = scmp.eq.s32.totalorder %s13, 0
      %p59 = por %p57, %p58
      %p60 = scmp.ne.s32.totalorder %s49, %s52
      %p61 = scmp.eq.s32.totalorder %s18, 1
      %p62 = por %p60, %p61
      %p63 = scmp.ne.s32.totalorder %s52, %s53
      %p64 = scmp.eq.s32.totalorder %s18, 0
      %p65 = por %p63, %p64
      %p66 = scmp.ne.s32.totalorder %s52, %s53
      %p67 = scmp.eq.s32.totalorder %s19, 1
      %p68 = por %p66, %p67
      %p70 = scmp.ne.s32.totalorder %s53, %s69
      %p71 = scmp.eq.s32.totalorder %s19, 0
      %p72 = por %p70, %p71
      %p73 = scmp.le.s32.totalorder 1, %s13
      %p74 = scmp.lt.s32.totalorder %s13, 3
      %p75 = pnand %p73, %p74
      %p76 = pneg %p75
      // Predicated region
      $region9: #{tpu_custom_call.1} parent=5 // pred_check
        _
      $region10: #{tpu_custom_call.1} parent=5 // pred_check_branch
        %78 = sbr.rel (%p75) target = $region12
      $region11: #{tpu_custom_call.1} parent=5 // pred_region
        %s79 = ssub.s32 %s13, 1
      $region12: #{tpu_custom_call.1} parent=5 // pred_fallthru
        _
      %p80 = scmp.lt.s32.totalorder %s13, 2
      // Predicated region
      $region13: #{tpu_custom_call.1} parent=5 // pred_check
        %p81 = pneg %p80
      $region14: #{tpu_custom_call.1} parent=5 // pred_check_branch
        %83 = sbr.rel (%p81) target = $region16
      $region15: #{tpu_custom_call.1} parent=5 // pred_region
        // Predicated region
        $region17: #{tpu_custom_call.1} parent=15 // pred_check
          %p84 = pneg %p33
        $region18: #{tpu_custom_call.1} parent=15 // pred_check_branch
          %86 = sbr.rel (%p84) target = $region20
        $region19: #{tpu_custom_call.1} parent=15 // pred_region
          %s87 = sand.u32 %s23, 1
          %s88 = scalar_lea.sflag [#allocation3], %s87
          %s89 = sand.u32 %s23, 1
          %s90 = smul.addr %s89, 32
          %s91 = scalar_lea.vmem [#allocation2], %s90
          %s92 = smul.u32 4, %s13
          %94 = vsyncadd %s88, 0
          %s95 = smul.addr %s92, 8
          %s96 = scalar_lea.hbm %s0, %s95
          %s97 = sshll.u32 %s96, 4
          %s98 = int_to_ptr.hbm [resolvable:$true] %s97
          %s99 = sshll.u32 %s91, 4
          %s100 = int_to_ptr.vmem [resolvable:$true] %s99
          %105 = dma.hbm_to_vmem [thread:$0]  %s98, 512, %s100, %s88, 128, 128, 8
        $region20: #{tpu_custom_call.1} parent=15 // pred_fallthru
          _
      $region16: #{tpu_custom_call.1} parent=5 // pred_fallthru
        _
      %p106 = scmp.le.s32.totalorder 1, %s13
      %p107 = scmp.lt.s32.totalorder %s13, 3
      %p108 = pnand %p106, %p107
      %p109 = pneg %p108
      // Predicated region
      $region21: #{tpu_custom_call.1} parent=5 // pred_check
        _
      $region22: #{tpu_custom_call.1} parent=5 // pred_check_branch
        %111 = sbr.rel (%p108) target = $region24
      $region23: #{tpu_custom_call.1} parent=5 // pred_region
        %s112 = ssub.s32 %s13, 1
        %s113 = sand.u32 %s26, 1
        %s114 = scalar_lea.sflag [#allocation3], %s113
        %s115 = sand.u32 %s26, 1
        %s116 = smul.addr %s115, 32
        %s117 = scalar_lea.vmem [#allocation2], %s116
        // Predicated region
        $region25: #{tpu_custom_call.1} parent=23 // pred_check
          %p118 = pneg %p39
        $region26: #{tpu_custom_call.1} parent=23 // pred_check_branch
          %120 = sbr.rel (%p118) target = $region28
        $region27: #{tpu_custom_call.1} parent=23 // pred_region
          %122 = dma.done %s114, 512
        $region28: #{tpu_custom_call.1} parent=23 // pred_fallthru
          _
        %s123 = sand.u32 %s26, 1
        %s124 = scalar_lea.sflag [#allocation3], %s123
        %s125 = sand.u32 %s26, 1
        %s126 = smul.addr %s125, 32
        %s127 = scalar_lea.vmem [#allocation2], %s126
        %p128 = pneg %p39
        %p129 = pneg %p36
        %p130 = pneg %p65
        %p131 = pneg %p62
        %s132 = sand.u32 %s52, 1
        %s133 = scalar_lea.sflag [#allocation4], %s132
        %s134 = sand.u32 %s52, 1
        %s135 = smul.addr %s134, 32
        %s136 = scalar_lea.vmem [#allocation5], %s135
        %s137 = smul.u32 4, %s18
        %s138 = smul.u32 4, %s18
        %v139 = vld [vmem:[%s117] sm:$0xff]
        %v140 = vld [vmem:[%s117 + $0x8] sm:$0xff]
        %v141 = vld [vmem:[%s117 + $0x10] sm:$0xff]
        %v142 = vld [vmem:[%s117 + $0x18] sm:$0xff]
        %v143 = vlaneseq
        %v144 = vand.u32 %v143, 127
        %v145 = vlaneseq
        %v146 = vshrl.u32 %v145, 7
        %vm147 = vcmp.eq.s32.totalorder %v144, 0
        %vm148 = vcmask 1047680
        %149 = vrot.lane.b32.xlu0 %v139, 16
        %v150 = vpop.permute.xlu0 %149
        %v151 = vsel %vm148, %v150, %v139
        %152 = vrot.lane.b32.xlu0 %v140, 16
        %v153 = vpop.permute.xlu0 %152
        %v154 = vsel %vm148, %v153, %v140
        %155 = vrot.lane.b32.xlu0 %v141, 16
        %v156 = vpop.permute.xlu0 %155
        %v157 = vsel %vm148, %v156, %v141
        %158 = vrot.lane.b32.xlu0 %v142, 16
        %v159 = vpop.permute.xlu0 %158
        %v160 = vsel %vm148, %v159, %v142
        %161 = vrot.lane.b32.xlu0 %v151, 16
        %v162 = vpop.permute.xlu0 %161
        %163 = vrot.lane.b32.xlu0 %v154, 16
        %v164 = vpop.permute.xlu0 %163
        %165 = vrot.lane.b32.xlu0 %v157, 16
        %v166 = vpop.permute.xlu0 %165
        %167 = vrot.lane.b32.xlu0 %v160, 16
        %v168 = vpop.permute.xlu0 %167
        %v169 = vsel %vm148, %v162, %v139
        %v170 = vsel %vm148, %v164, %v140
        %v171 = vsel %vm148, %v166, %v141
        %v172 = vsel %vm148, %v168, %v142
        %177 = vrot.lane.b32.xlu0 %v169, 113
        %v178 = vpop.permute.xlu0 %177
        %179 = vrot.lane.b32.xlu0 %v170, 113
        %v180 = vpop.permute.xlu0 %179
        %181 = vrot.lane.b32.xlu0 %v171, 113
        %v182 = vpop.permute.xlu0 %181
        %183 = vrot.lane.b32.xlu0 %v172, 113
        %v184 = vpop.permute.xlu0 %183
        %v189 = vsel %vm147, -inf, %v178
        %v190 = vsel %vm147, -inf, %v180
        %v191 = vsel %vm147, -inf, %v182
        %v192 = vsel %vm147, -inf, %v184
        %197 = vrot.lane.b32.xlu0 %v139, 112
        %v198 = vpop.permute.xlu0 %197
        %199 = vrot.lane.b32.xlu0 %v140, 112
        %v200 = vpop.permute.xlu0 %199
        %201 = vrot.lane.b32.xlu0 %v141, 112
        %v202 = vpop.permute.xlu0 %201
        %203 = vrot.lane.b32.xlu0 %v142, 112
        %v204 = vpop.permute.xlu0 %203
        %209 = vrot.lane.b32.xlu0 %v198, 16
        %v210 = vpop.permute.xlu0 %209
        %v211 = vsel %vm148, %v210, %v198
        %212 = vrot.lane.b32.xlu0 %v200, 16
        %v213 = vpop.permute.xlu0 %212
        %v214 = vsel %vm148, %v213, %v200
        %215 = vrot.lane.b32.xlu0 %v202, 16
        %v216 = vpop.permute.xlu0 %215
        %v217 = vsel %vm148, %v216, %v202
        %218 = vrot.lane.b32.xlu0 %v204, 16
        %v219 = vpop.permute.xlu0 %218
        %v220 = vsel %vm148, %v219, %v204
        %221 = vrot.lane.b32.xlu0 %v211, 16
        %v222 = vpop.permute.xlu0 %221
        %223 = vrot.lane.b32.xlu0 %v214, 16
        %v224 = vpop.permute.xlu0 %223
        %225 = vrot.lane.b32.xlu0 %v217, 16
        %v226 = vpop.permute.xlu0 %225
        %227 = vrot.lane.b32.xlu0 %v220, 16
        %v228 = vpop.permute.xlu0 %227
        %v229 = vsel %vm148, %v222, %v198
        %v230 = vsel %vm148, %v224, %v200
        %v231 = vsel %vm148, %v226, %v202
        %v232 = vsel %vm148, %v228, %v204
        %237 = vrot.lane.b32.xlu0 %v229, 113
        %v238 = vpop.permute.xlu0 %237
        %239 = vrot.lane.b32.xlu0 %v230, 113
        %v240 = vpop.permute.xlu0 %239
        %241 = vrot.lane.b32.xlu0 %v231, 113
        %v242 = vpop.permute.xlu0 %241
        %243 = vrot.lane.b32.xlu0 %v232, 113
        %v244 = vpop.permute.xlu0 %243
        %v249 = vsel %vm147, -inf, %v238
        %v250 = vsel %vm147, -inf, %v240
        %v251 = vsel %vm147, -inf, %v242
        %v252 = vsel %vm147, -inf, %v244
        %v253 = vmax.f32 %v189, %v139
        %v254 = vmax.f32 %v190, %v140
        %v255 = vmax.f32 %v191, %v141
        %v256 = vmax.f32 %v192, %v142
        %v257 = vmax.f32 %v249, %v198
        %v258 = vmax.f32 %v250, %v200
        %v259 = vmax.f32 %v251, %v202
        %v260 = vmax.f32 %v252, %v204
        %vm261 = vcmp.eq.s32.totalorder %v146, 0
        %v262 = vrot.slane %v257, 7
        %v263 = vrot.slane %v258, 7
        %v264 = vrot.slane %v259, 7
        %v265 = vrot.slane %v260, 7
        %v266 = vsel %vm261, -inf, %v262
        %v267 = vsel %vm261, -inf, %v263
        %v268 = vsel %vm261, -inf, %v264
        %v269 = vsel %vm261, -inf, %v265
        %vm270 = vcmp.eq.s32.totalorder %v146, 7
        %v271 = vrot.slane %v253, 1
        %v272 = vrot.slane %v254, 1
        %v273 = vrot.slane %v255, 1
        %v274 = vrot.slane %v256, 1
        %v275 = vsel %vm270, -inf, %v271
        %v276 = vsel %vm270, -inf, %v272
        %v277 = vsel %vm270, -inf, %v273
        %v278 = vsel %vm270, -inf, %v274
        %v279 = vmax.f32 %v266, %v253
        %v280 = vmax.f32 %v267, %v254
        %v281 = vmax.f32 %v268, %v255
        %v282 = vmax.f32 %v269, %v256
        %v283 = vmax.f32 %v253, %v257
        %v284 = vmax.f32 %v254, %v258
        %v285 = vmax.f32 %v255, %v259
        %v286 = vmax.f32 %v256, %v260
        %v287 = vmax.f32 %v257, %v275
        %v288 = vmax.f32 %v258, %v276
        %v289 = vmax.f32 %v259, %v277
        %v290 = vmax.f32 %v260, %v278
        %v291 = vmul.f32 %v279, 0.125
        %v292 = vmul.f32 %v280, 0.125
        %v293 = vmul.f32 %v281, 0.125
        %v294 = vmul.f32 %v282, 0.125
        %v295 = vmul.f32 %v283, 0.375
        %v296 = vmul.f32 %v284, 0.375
        %v297 = vmul.f32 %v285, 0.375
        %v298 = vmul.f32 %v286, 0.375
        %v299 = vadd.f32 %v291, %v295
        %v300 = vadd.f32 %v292, %v296
        %v301 = vadd.f32 %v293, %v297
        %v302 = vadd.f32 %v294, %v298
        %v303 = vmul.f32 %v287, 0.375
        %v304 = vmul.f32 %v288, 0.375
        %v305 = vmul.f32 %v289, 0.375
        %v306 = vmul.f32 %v290, 0.375
        %v307 = vadd.f32 %v299, %v303
        %v308 = vadd.f32 %v300, %v304
        %v309 = vadd.f32 %v301, %v305
        %v310 = vadd.f32 %v302, %v306
        %311 = vrot.lane.b32.xlu0 %v139, 97
        %v312 = vpop.permute.xlu0 %311
        %313 = vrot.lane.b32.xlu0 %v140, 97
        %v314 = vpop.permute.xlu0 %313
        %315 = vrot.lane.b32.xlu0 %v141, 97
        %v316 = vpop.permute.xlu0 %315
        %317 = vrot.lane.b32.xlu0 %v142, 97
        %v318 = vpop.permute.xlu0 %317
        %v323 = vrot.slane %v312, 7
        %v324 = vrot.slane %v314, 7
        %v325 = vrot.slane %v316, 7
        %v326 = vrot.slane %v318, 7
        %v327 = vsel %vm261, -inf, %v323
        %v328 = vsel %vm261, -inf, %v324
        %v329 = vsel %vm261, -inf, %v325
        %v330 = vsel %vm261, -inf, %v326
        %331 = vrot.lane.b32.xlu0 %v139, 113
        %v332 = vpop.permute.xlu0 %331
        %333 = vrot.lane.b32.xlu0 %v140, 113
        %v334 = vpop.permute.xlu0 %333
        %335 = vrot.lane.b32.xlu0 %v141, 113
        %v336 = vpop.permute.xlu0 %335
        %337 = vrot.lane.b32.xlu0 %v142, 113
        %v338 = vpop.permute.xlu0 %337
        %v343 = vrot.slane %v332, 1
        %v344 = vrot.slane %v334, 1
        %v345 = vrot.slane %v336, 1
        %v346 = vrot.slane %v338, 1
        %v347 = vsel %vm270, -inf, %v343
        %v348 = vsel %vm270, -inf, %v344
        %v349 = vsel %vm270, -inf, %v345
        %v350 = vsel %vm270, -inf, %v346
        %v351 = vmax.f32 %v327, %v332
        %v352 = vmax.f32 %v328, %v334
        %v353 = vmax.f32 %v329, %v336
        %v354 = vmax.f32 %v330, %v338
        %v355 = vmul.f32 %v351, 0.125
        %v356 = vmul.f32 %v352, 0.125
        %v357 = vmul.f32 %v353, 0.125
        %v358 = vmul.f32 %v354, 0.125
        %v359 = vmax.f32 %v139, %v198
        %v360 = vmax.f32 %v140, %v200
        %v361 = vmax.f32 %v141, %v202
        %v362 = vmax.f32 %v142, %v204
        %v363 = vmul.f32 %v359, 0.375
        %v364 = vmul.f32 %v360, 0.375
        %v365 = vmul.f32 %v361, 0.375
        %v366 = vmul.f32 %v362, 0.375
        %371 = vrot.lane.b32.xlu0 %v363, 113
        %v372 = vpop.permute.xlu0 %371
        %373 = vrot.lane.b32.xlu0 %v364, 113
        %v374 = vpop.permute.xlu0 %373
        %375 = vrot.lane.b32.xlu0 %v365, 113
        %v376 = vpop.permute.xlu0 %375
        %377 = vrot.lane.b32.xlu0 %v366, 113
        %v378 = vpop.permute.xlu0 %377
        %v383 = vadd.f32 %v355, %v372
        %v384 = vadd.f32 %v356, %v374
        %v385 = vadd.f32 %v357, %v376
        %v386 = vadd.f32 %v358, %v378
        %391 = vrot.lane.b32.xlu0 %v347, 31
        %v392 = vpop.permute.xlu0 %391
        %393 = vrot.lane.b32.xlu0 %v348, 31
        %v394 = vpop.permute.xlu0 %393
        %395 = vrot.lane.b32.xlu0 %v349, 31
        %v396 = vpop.permute.xlu0 %395
        %397 = vrot.lane.b32.xlu0 %v350, 31
        %v398 = vpop.permute.xlu0 %397
        %v403 = vmax.f32 %v139, %v392
        %v404 = vmax.f32 %v140, %v394
        %v405 = vmax.f32 %v141, %v396
        %v406 = vmax.f32 %v142, %v398
        %v407 = vmul.f32 %v403, 0.375
        %v408 = vmul.f32 %v404, 0.375
        %v409 = vmul.f32 %v405, 0.375
        %v410 = vmul.f32 %v406, 0.375
        %415 = vrot.lane.b32.xlu0 %v407, 97
        %v416 = vpop.permute.xlu0 %415
        %417 = vrot.lane.b32.xlu0 %v408, 97
        %v418 = vpop.permute.xlu0 %417
        %419 = vrot.lane.b32.xlu0 %v409, 97
        %v420 = vpop.permute.xlu0 %419
        %421 = vrot.lane.b32.xlu0 %v410, 97
        %v422 = vpop.permute.xlu0 %421
        %v427 = vadd.f32 %v383, %v416
        %v428 = vadd.f32 %v384, %v418
        %v429 = vadd.f32 %v385, %v420
        %v430 = vadd.f32 %v386, %v422
        %431 = vrot.lane.b32.xlu0 %v307, 16
        %v432 = vpop.permute.xlu0 %431
        %v433 = vsel %vm148, %v432, %v307
        %434 = vrot.lane.b32.xlu0 %v308, 16
        %v435 = vpop.permute.xlu0 %434
        %v436 = vsel %vm148, %v435, %v308
        %437 = vrot.lane.b32.xlu0 %v309, 16
        %v438 = vpop.permute.xlu0 %437
        %v439 = vsel %vm148, %v438, %v309
        %440 = vrot.lane.b32.xlu0 %v310, 16
        %v441 = vpop.permute.xlu0 %440
        %v442 = vsel %vm148, %v441, %v310
        %443 = vrot.lane.b32.xlu0 %v433, 16
        %v444 = vpop.permute.xlu0 %443
        %445 = vrot.lane.b32.xlu0 %v436, 16
        %v446 = vpop.permute.xlu0 %445
        %447 = vrot.lane.b32.xlu0 %v439, 16
        %v448 = vpop.permute.xlu0 %447
        %449 = vrot.lane.b32.xlu0 %v442, 16
        %v450 = vpop.permute.xlu0 %449
        %v451 = vsel %vm148, %v444, %v307
        %v452 = vsel %vm148, %v446, %v308
        %v453 = vsel %vm148, %v448, %v309
        %v454 = vsel %vm148, %v450, %v310
        %vm455 = vcmp.eq.s32.totalorder %v144, 14
        %457 = vset.pattern.permute.xlu0 0
        %458 = vperm.xlu0 %457, %v427
        %v459 = vpop.permute.xlu0 %458
        %462 = vset.pattern.permute.xlu0 0
        %463 = vperm.xlu0 %462, %v428
        %v464 = vpop.permute.xlu0 %463
        %467 = vset.pattern.permute.xlu0 0
        %468 = vperm.xlu0 %467, %v429
        %v469 = vpop.permute.xlu0 %468
        %472 = vset.pattern.permute.xlu0 0
        %473 = vperm.xlu0 %472, %v430
        %v474 = vpop.permute.xlu0 %473
        %480 = vrot.lane.b32.xlu0 %v451, 126
        %v481 = vpop.permute.xlu0 %480
        %482 = vrot.lane.b32.xlu0 %v452, 126
        %v483 = vpop.permute.xlu0 %482
        %484 = vrot.lane.b32.xlu0 %v453, 126
        %v485 = vpop.permute.xlu0 %484
        %486 = vrot.lane.b32.xlu0 %v454, 126
        %v487 = vpop.permute.xlu0 %486
        %v492 = vsel %vm455, %v459, %v481
        %v493 = vsel %vm455, %v464, %v483
        %v494 = vsel %vm455, %v469, %v485
        %v495 = vsel %vm455, %v474, %v487
        %v496 = vmul.f32 %v307, 0.125
        %v497 = vmul.f32 %v308, 0.125
        %v498 = vmul.f32 %v309, 0.125
        %v499 = vmul.f32 %v310, 0.125
        %v500 = vmul.f32 %v451, 0.375
        %v501 = vmul.f32 %v452, 0.375
        %v502 = vmul.f32 %v453, 0.375
        %v503 = vmul.f32 %v454, 0.375
        %508 = vrot.lane.b32.xlu0 %v500, 127
        %v509 = vpop.permute.xlu0 %508
        %510 = vrot.lane.b32.xlu0 %v501, 127
        %v511 = vpop.permute.xlu0 %510
        %512 = vrot.lane.b32.xlu0 %v502, 127
        %v513 = vpop.permute.xlu0 %512
        %514 = vrot.lane.b32.xlu0 %v503, 127
        %v515 = vpop.permute.xlu0 %514
        %v520 = vadd.f32 %v496, %v509
        %v521 = vadd.f32 %v497, %v511
        %v522 = vadd.f32 %v498, %v513
        %v523 = vadd.f32 %v499, %v515
        %v524 = vmul.f32 %v492, 0.375
        %v525 = vmul.f32 %v493, 0.375
        %v526 = vmul.f32 %v494, 0.375
        %v527 = vmul.f32 %v495, 0.375
        %v528 = vadd.f32 %v520, %v524
        %v529 = vadd.f32 %v521, %v525
        %v530 = vadd.f32 %v522, %v526
        %v531 = vadd.f32 %v523, %v527
        %vm532 = vcmask 130048
        %533 = vst.msk [vmem:[%s136] sm:$0xff] %vm532, %v528
        %534 = vst.msk [vmem:[%s136 + $0x8] sm:$0xff] %vm532, %v529
        %535 = vst.msk [vmem:[%s136 + $0x10] sm:$0xff] %vm532, %v530
        %536 = vst.msk [vmem:[%s136 + $0x18] sm:$0xff] %vm532, %v531
        %s537 = sand.u32 %s52, 1
        %s538 = scalar_lea.sflag [#allocation4], %s537
        %s539 = sand.u32 %s52, 1
        %s540 = smul.addr %s539, 32
        %s541 = scalar_lea.vmem [#allocation5], %s540
        // Predicated region
        $region29: #{tpu_custom_call.1} parent=23 // pred_check
          %p542 = pneg %p62
        $region30: #{tpu_custom_call.1} parent=23 // pred_check_branch
          %544 = sbr.rel (%p542) target = $region32
        $region31: #{tpu_custom_call.1} parent=23 // pred_region
          %s545 = smul.u32 4, %s18
          %547 = vsyncadd %s538, 0
          %s548 = smul.addr %s545, 8
          %s549 = scalar_lea.hbm %s1, %s548
          %s550 = sshll.u32 %s541, 4
          %s551 = int_to_ptr.vmem [resolvable:$true] %s550
          %s552 = sshll.u32 %s549, 4
          %s553 = int_to_ptr.hbm [resolvable:$true] %s552
          %558 = dma.vmem_to_hbm [thread:$0]  %s551, 512, %s553, %s538, 128, 128, 8
        $region32: #{tpu_custom_call.1} parent=23 // pred_fallthru
          _
      $region24: #{tpu_custom_call.1} parent=5 // pred_fallthru
        _
      %p559 = scmp.le.s32.totalorder 2, %s13
      // Predicated region
      $region33: #{tpu_custom_call.1} parent=5 // pred_check
        %p560 = pneg %p559
      $region34: #{tpu_custom_call.1} parent=5 // pred_check_branch
        %562 = sbr.rel (%p560) target = $region36
      $region35: #{tpu_custom_call.1} parent=5 // pred_region
        %s563 = ssub.s32 %s13, 2
        // Predicated region
        $region37: #{tpu_custom_call.1} parent=35 // pred_check
          %p564 = pneg %p68
        $region38: #{tpu_custom_call.1} parent=35 // pred_check_branch
          %566 = sbr.rel (%p564) target = $region40
        $region39: #{tpu_custom_call.1} parent=35 // pred_region
          %s567 = sand.u32 %s53, 1
          %s568 = scalar_lea.sflag [#allocation4], %s567
          %s569 = sand.u32 %s53, 1
          %s570 = smul.addr %s569, 32
          %s571 = scalar_lea.vmem [#allocation5], %s570
          %573 = dma.done %s568, 512
        $region40: #{tpu_custom_call.1} parent=35 // pred_fallthru
          _
      $region36: #{tpu_custom_call.1} parent=5 // pred_fallthru
        _
    $region6: #{tpu_custom_call.1} parent=1 // loop_footer
      %s17 = sadd.s32 1, %s13
    $region7: #{tpu_custom_call.1} parent=1 // loop_footer_branch
      %12 = sbr.rel target = $region3
    $region8: #{tpu_custom_call.1} parent=1 // loop_exit
      _
    %574 = vsyncpa [#allocation3], 1
    %s575 = scalar_lea.sflag [#allocation3], 1
    %576 = vsyncpa %s575, 1
    %577 = vsyncpa [#allocation4], 1
    %s578 = scalar_lea.sflag [#allocation4], 1
    %579 = vsyncpa %s578, 1

</llo_original>
